<compile_context>
chip_gen: v7x
topology: tpu7x:2x2x1
jax: 0.10.0
libtpu: 0.0.40
codegen_flags: <defaults>
</compile_context>

<pallas_src>
import jax
import jax.numpy as jnp
from jax.experimental import pallas as pl
from jax.experimental.pallas import tpu as pltpu


def _round_up(n, m):
    return ((n + m - 1) // m) * m


def mlp_kernel(x_ref, w1_ref, b1_ref, w2_ref, b2_ref, w3_ref, b3_ref, o_ref):
    # x tile: (TILE_B, 17) f32 -> bf16 for the MXU (accumulation stays f32).
    x16 = x_ref[...].astype(jnp.bfloat16)

    # layer_1 + ReLU   (weights are the pushed/stationary MXU operand)
    h = jnp.dot(x16, w1_ref[...], preferred_element_type=jnp.float32) + b1_ref[...]
    h = jnp.maximum(h, 0.0)                                        # (TILE_B, 64) f32

    # layer_2 + ReLU   (batchnorm1 already folded into W2/b2)
    h = jnp.dot(h.astype(jnp.bfloat16), w2_ref[...],
                preferred_element_type=jnp.float32) + b2_ref[...]
    h = jnp.maximum(h, 0.0)                                        # (TILE_B, 64) f32

    # dropout (eval mode) = identity.
    # layer_out (batchnorm2 folded into w3/b3): M=1 matmul moved off the MXU ->
    # VPU elementwise multiply + cross-lane (XLU) reduction, all in f32.
    o_ref[...] = jnp.sum(h * w3_ref[...], axis=-1, keepdims=True) + b3_ref[...]


def binary_classification_forward(x, params, tile_b=None):
    """x: (B, 17) float32 (batch-major, as the module expects). params: see fold_params_for_kernel."""
    (w1, b1, w2, b2, w3_row, b3) = params
    B = x.shape[0]

    if tile_b is None:
        if B <= 256:
            tile_b = _round_up(B, 8)                  # one small tile
        else:
            # Large tiles amortize the ~0.35us per-grid-step overhead; keep >= 2 tiles so both
            # v7x TensorCores get work; cap at 4096 to stay well inside the 32 MiB VMEM scope.
            tile_b = min(4096, _round_up(pl.cdiv(B, 2), 128))
    tile_b = max(8, min(tile_b, _round_up(B, 8)))
    n_tiles = pl.cdiv(B, tile_b)
    B_pad = n_tiles * tile_b

    if B_pad != B:
        x = jnp.pad(x, ((0, B_pad - B), (0, 0)))      # zero rows -> finite outputs, sliced off below

    out = pl.pallas_call(
        mlp_kernel,
        out_shape=jax.ShapeDtypeStruct((B_pad, 1), jnp.float32),
        grid=(n_tiles,),
        in_specs=[
            pl.BlockSpec((tile_b, 17), lambda i: (i, 0)),   # x tile marches over batch (contiguous)
            pl.BlockSpec((17, 64), lambda i: (0, 0)),       # W1 (bf16), VMEM-resident across steps
            pl.BlockSpec((1, 64), lambda i: (0, 0)),        # b1 (f32)
            pl.BlockSpec((64, 64), lambda i: (0, 0)),       # W2 folded (bf16)
            pl.BlockSpec((1, 64), lambda i: (0, 0)),        # b2 folded (f32)
            pl.BlockSpec((1, 64), lambda i: (0, 0)),        # w3 row (f32, VPU finale)
            pl.BlockSpec((1, 1), lambda i: (0, 0)),         # b3 folded (f32)
        ],
        out_specs=pl.BlockSpec((tile_b, 1), lambda i: (i, 0)),
        compiler_params=pltpu.CompilerParams(
            dimension_semantics=("parallel",),              # shard batch tiles across TCs (v7x)
            vmem_limit_bytes=32 * 1024 * 1024,              # v5e scoped default is only 16 MiB
        ),
    )(x, w1, b1, w2, b2, w3_row, b3)

    return out[:B]                                           # (B, 1)


def make_params(key):
    """Deterministic raw parameters (shapes/semantics from the PyTorch __init__, eval mode)."""
    ks = jax.random.split(key, 10)
    eps = 1e-5

    def lin(kw, kb, fan_in, fan_out):
        bound = 1.0 / jnp.sqrt(fan_in)
        w = jax.random.uniform(kw, (fan_in, fan_out), jnp.float32, -bound, bound)
        b = jax.random.uniform(kb, (fan_out,), jnp.float32, -bound, bound)
        return w, b

    w1, b1 = lin(ks[0], ks[1], 17, 64)
    w2, b2 = lin(ks[2], ks[3], 64, 64)
    w3, b3 = lin(ks[4], ks[5], 64, 1)

    def bn(kg, kb, n):
        gamma = 1.0 + 0.1 * jax.random.normal(kg, (n,), jnp.float32)
        beta = 0.1 * jax.random.normal(kb, (n,), jnp.float32)
        mean = jnp.zeros((n,), jnp.float32)
        var = jnp.ones((n,), jnp.float32)
        scale = gamma / jnp.sqrt(var + eps)
        shift = beta - mean * scale
        return scale, shift

    s1, t1 = bn(ks[6], ks[7], 64)
    s2, t2 = bn(ks[8], ks[9], 64)

    return (w1, b1, s1, t1, w2, b2, s2, t2, w3, b3)


def fold_params_for_kernel(raw):
    """One-time constant fold of eval-mode BN into the following linear layer (exact in f32),
    then cast the big matmul weights to bf16; biases stay f32 rows for sublane broadcast."""
    (w1, b1, s1, t1, w2, b2, s2, t2, w3, b3) = raw
    # relu(h)*s1 + t1 then @W2 + b2  ==  relu(h) @ (s1[:,None]*W2) + (t1@W2 + b2)
    w2f = s1[:, None] * w2                  # (64, 64)
    b2f = t1 @ w2 + b2                      # (64,)
    w3f = s2[:, None] * w3                  # (64, 1)
    b3f = t2 @ w3 + b3                      # (1,)
    return (w1.astype(jnp.bfloat16), b1[None, :],
            w2f.astype(jnp.bfloat16), b2f[None, :],
            w3f.reshape(1, 64), b3f.reshape(1, 1))


def reference_forward(x, raw):
    """Pure-JAX f32 reference in the original (unfolded) formulation."""
    (w1, b1, s1, t1, w2, b2, s2, t2, w3, b3) = raw
    h = jnp.maximum(x @ w1 + b1, 0.0)
    h = h * s1 + t1
    h = jnp.maximum(h @ w2 + b2, 0.0)
    h = h * s2 + t2
    return h @ w3 + b3


def reference_forward_folded(x, params):
    """Pure-JAX reference using the same folded/bf16 parameters as the kernel."""
    (w1, b1, w2, b2, w3_row, b3) = params
    h = jnp.dot(x.astype(jnp.bfloat16), w1, preferred_element_type=jnp.float32) + b1
    h = jnp.maximum(h, 0.0)
    h = jnp.dot(h.astype(jnp.bfloat16), w2, preferred_element_type=jnp.float32) + b2
    h = jnp.maximum(h, 0.0)
    return jnp.sum(h * w3_row, axis=-1, keepdims=True) + b3


if __name__ == "__main__":
    key = jax.random.PRNGKey(0)
    k_x, k_x2, k_p = jax.random.split(key, 3)

    raw = make_params(k_p)
    params = fold_params_for_kernel(raw)

    # Small single-tile case.
    B = 8
    x = jax.random.normal(k_x, (B, 17), jnp.float32)
    out = jax.block_until_ready(binary_classification_forward(x, params))
    assert out.shape == (B, 1)
    assert jnp.allclose(out, reference_forward_folded(x, params), atol=1e-3, rtol=1e-3)
    assert jnp.allclose(out, reference_forward(x, raw), atol=3e-2, rtol=3e-2)  # bf16 operand tolerance

    # Multi-tile + padded-batch path (exercises grid > 1 and the batch pad/slice).
    B2 = 640
    x2 = jax.random.normal(k_x2, (B2, 17), jnp.float32)
    out2 = jax.block_until_ready(binary_classification_forward(x2, params))
    assert out2.shape == (B2, 1)
    assert jnp.allclose(out2, reference_forward_folded(x2, params), atol=1e-3, rtol=1e-3)
    assert jnp.allclose(out2, reference_forward(x2, raw), atol=3e-2, rtol=3e-2)

    print("KERNEL_OK")
</pallas_src>

<mosaic_0001>
module attributes {stable_mosaic.version = 11 : i64} {
  func.func @mlp_kernel(%arg0: i32, %arg1: memref<8x17xf32, #tpu.memory_space<vmem>>, %arg2: memref<17x64xbf16, #tpu.memory_space<vmem>>, %arg3: memref<1x64xf32, #tpu.memory_space<vmem>>, %arg4: memref<64x64xbf16, #tpu.memory_space<vmem>>, %arg5: memref<1x64xf32, #tpu.memory_space<vmem>>, %arg6: memref<1x64xf32, #tpu.memory_space<vmem>>, %arg7: memref<1x1xf32, #tpu.memory_space<vmem>>, %arg8: memref<8x1xf32, #tpu.memory_space<vmem>>) attributes {dimension_semantics = [#tpu.dimension_semantics<parallel>], iteration_bounds = array<i64: 1>, scalar_prefetch = 0 : i64, scratch_operands = 0 : i64, tpu.core_type = #tpu.core_type<tc>, window_params = [{transform_indices = @transform_0, window_bounds = array<i64: 8, 17>}, {pipeline_mode = #tpu.pipeline_mode<synchronous>, transform_indices = @transform_1, window_bounds = array<i64: 17, 64>}, {pipeline_mode = #tpu.pipeline_mode<synchronous>, transform_indices = @transform_2, window_bounds = array<i64: 1, 64>}, {pipeline_mode = #tpu.pipeline_mode<synchronous>, transform_indices = @transform_3, window_bounds = array<i64: 64, 64>}, {pipeline_mode = #tpu.pipeline_mode<synchronous>, transform_indices = @transform_4, window_bounds = array<i64: 1, 64>}, {pipeline_mode = #tpu.pipeline_mode<synchronous>, transform_indices = @transform_5, window_bounds = array<i64: 1, 64>}, {pipeline_mode = #tpu.pipeline_mode<synchronous>, transform_indices = @transform_6, window_bounds = array<i64: 1, 1>}, {transform_indices = @transform_7, window_bounds = array<i64: 8, 1>}]} {
    %c0 = arith.constant 0 : index
    %c0_0 = arith.constant 0 : index
    %0 = vector.load %arg1[%c0, %c0_0] : memref<8x17xf32, #tpu.memory_space<vmem>>, vector<8x17xf32>
    %1 = arith.truncf %0 : vector<8x17xf32> to vector<8x17xbf16>
    %c0_1 = arith.constant 0 : index
    %c0_2 = arith.constant 0 : index
    %2 = vector.load %arg2[%c0_1, %c0_2] : memref<17x64xbf16, #tpu.memory_space<vmem>>, vector<17x64xbf16>
    %cst = arith.constant dense<0.000000e+00> : vector<8x64xf32>
    %3 = tpu.matmul %1, %2, %cst {dimension_numbers = #tpu.dot_dimension_numbers<[1], [0], [0], [1], [0, 0, 1, 1], [], []>} : vector<8x17xbf16>, vector<17x64xbf16>, vector<8x64xf32> -> vector<8x64xf32>
    %c0_3 = arith.constant 0 : index
    %c0_4 = arith.constant 0 : index
    %4 = vector.load %arg3[%c0_3, %c0_4] : memref<1x64xf32, #tpu.memory_space<vmem>>, vector<1x64xf32>
    %5 = vector.broadcast %4 : vector<1x64xf32> to vector<8x64xf32>
    %6 = arith.addf %3, %5 : vector<8x64xf32>
    %cst_5 = arith.constant 0.000000e+00 : f32
    %7 = vector.broadcast %cst_5 : f32 to vector<8x64xf32>
    %8 = arith.maximumf %6, %7 : vector<8x64xf32>
    %9 = arith.truncf %8 : vector<8x64xf32> to vector<8x64xbf16>
    %c0_6 = arith.constant 0 : index
    %c0_7 = arith.constant 0 : index
    %10 = vector.load %arg4[%c0_6, %c0_7] : memref<64x64xbf16, #tpu.memory_space<vmem>>, vector<64x64xbf16>
    %cst_8 = arith.constant dense<0.000000e+00> : vector<8x64xf32>
    %11 = tpu.matmul %9, %10, %cst_8 {dimension_numbers = #tpu.dot_dimension_numbers<[1], [0], [0], [1], [0, 0, 1, 1], [], []>} : vector<8x64xbf16>, vector<64x64xbf16>, vector<8x64xf32> -> vector<8x64xf32>
    %c0_9 = arith.constant 0 : index
    %c0_10 = arith.constant 0 : index
    %12 = vector.load %arg5[%c0_9, %c0_10] : memref<1x64xf32, #tpu.memory_space<vmem>>, vector<1x64xf32>
    %13 = vector.broadcast %12 : vector<1x64xf32> to vector<8x64xf32>
    %14 = arith.addf %11, %13 : vector<8x64xf32>
    %cst_11 = arith.constant 0.000000e+00 : f32
    %15 = vector.broadcast %cst_11 : f32 to vector<8x64xf32>
    %16 = arith.maximumf %14, %15 : vector<8x64xf32>
    %c0_12 = arith.constant 0 : index
    %c0_13 = arith.constant 0 : index
    %17 = vector.load %arg6[%c0_12, %c0_13] : memref<1x64xf32, #tpu.memory_space<vmem>>, vector<1x64xf32>
    %18 = vector.broadcast %17 : vector<1x64xf32> to vector<8x64xf32>
    %19 = arith.mulf %16, %18 : vector<8x64xf32>
    %cst_14 = arith.constant dense<0.000000e+00> : vector<8xf32>
    %20 = vector.multi_reduction <add>, %19, %cst_14 [1] : vector<8x64xf32> to vector<8xf32>
    %21 = vector.shape_cast %20 : vector<8xf32> to vector<8x1xf32>
    %c0_15 = arith.constant 0 : index
    %c0_16 = arith.constant 0 : index
    %22 = vector.load %arg7[%c0_15, %c0_16] : memref<1x1xf32, #tpu.memory_space<vmem>>, vector<1x1xf32>
    %23 = vector.broadcast %22 : vector<1x1xf32> to vector<8x1xf32>
    %24 = arith.addf %21, %23 : vector<8x1xf32>
    %c0_17 = arith.constant 0 : index
    %c0_18 = arith.constant 0 : index
    %25 = vector.load %arg8[%c0_17, %c0_18] : memref<8x1xf32, #tpu.memory_space<vmem>>, vector<8x1xf32>
    tpu.vector_store %arg8[%c0_17, %c0_18], %24 {strides = array<i32>} : memref<8x1xf32, #tpu.memory_space<vmem>>, vector<8x1xf32>,
    return
  }
  func.func @transform_0(%arg0: i32) -> (i32, i32) {
    %c0_i32 = arith.constant 0 : i32
    %c0_i32_0 = arith.constant 0 : i32
    return %arg0, %c0_i32 : i32, i32
  }
  func.func @transform_1(%arg0: i32) -> (i32, i32) {
    %c0_i32 = arith.constant 0 : i32
    %c0_i32_0 = arith.constant 0 : i32
    %c0_i32_1 = arith.constant 0 : i32
    return %c0_i32, %c0_i32_0 : i32, i32
  }
  func.func @transform_2(%arg0: i32) -> (i32, i32) {
    %c0_i32 = arith.constant 0 : i32
    %c0_i32_0 = arith.constant 0 : i32
    %c0_i32_1 = arith.constant 0 : i32
    return %c0_i32, %c0_i32_0 : i32, i32
  }
  func.func @transform_3(%arg0: i32) -> (i32, i32) {
    %c0_i32 = arith.constant 0 : i32
    %c0_i32_0 = arith.constant 0 : i32
    %c0_i32_1 = arith.constant 0 : i32
    return %c0_i32, %c0_i32_0 : i32, i32
  }
  func.func @transform_4(%arg0: i32) -> (i32, i32) {
    %c0_i32 = arith.constant 0 : i32
    %c0_i32_0 = arith.constant 0 : i32
    %c0_i32_1 = arith.constant 0 : i32
    return %c0_i32, %c0_i32_0 : i32, i32
  }
  func.func @transform_5(%arg0: i32) -> (i32, i32) {
    %c0_i32 = arith.constant 0 : i32
    %c0_i32_0 = arith.constant 0 : i32
    %c0_i32_1 = arith.constant 0 : i32
    return %c0_i32, %c0_i32_0 : i32, i32
  }
  func.func @transform_6(%arg0: i32) -> (i32, i32) {
    %c0_i32 = arith.constant 0 : i32
    %c0_i32_0 = arith.constant 0 : i32
    %c0_i32_1 = arith.constant 0 : i32
    return %c0_i32, %c0_i32_0 : i32, i32
  }
  func.func @transform_7(%arg0: i32) -> (i32, i32) {
    %c0_i32 = arith.constant 0 : i32
    %c0_i32_0 = arith.constant 0 : i32
    return %arg0, %c0_i32 : i32, i32
  }
}

</mosaic_0001>

<llo_original>
// kernel: tpu_custom_call.1
$region0: #{tpu_custom_call.1}
  #allocation0 [shape = 'u32[]', space=smem, size = 0x4, offset = 0x4, fixed_abs, tag = 'smem constant byte address 0x4 - core index']
  #allocation1 [shape = 'u32[144,128]{1,0:T(1,128)}', space=vmem, size = 0x12000, scoped, tag = 'internal scratch']
  #allocation2 [shape = 'f32[1,1]{1,0:T(1,128)S(1)}', space=vmem, size = 0x200, scoped, tag = 'scoped memory for tpu_custom_call.1']
  %s0 = inlined_call_operand.hbm [shape: f32[8,17], index: 0, kind: input, shape index: {}]
  %s1 = inlined_call_operand.hbm [shape: bf16[17,64], index: 1, kind: input, shape index: {}]
  %s2 = inlined_call_operand.vmem [shape: f32[1,64], index: 2, kind: input, shape index: {}]
  %s3 = inlined_call_operand.hbm [shape: bf16[64,64], index: 3, kind: input, shape index: {}]
  %s4 = inlined_call_operand.vmem [shape: f32[1,64], index: 4, kind: input, shape index: {}]
  %s5 = inlined_call_operand.vmem [shape: f32[1,64], index: 5, kind: input, shape index: {}]
  %s6 = inlined_call_operand.<no memory space> [shape: f32[1,1], index: 6, kind: input, shape index: {}]
  %s7 = inlined_call_operand.vmem [shape: f32[8,1], index: 7, kind: output, shape index: {}]
  %s8 = sld [smem:[#allocation0]]
  $region50: #{tpu_custom_call.1} parent=0
    _
  %s10 = ssub.s32 1, %s8
  %s11 = scalar_select 0, %s10, %s8
  %v12 = vstv %s6
  %13 = vst [vmem:[#allocation2] sm:$0x1] %v12
  $region1: #{tpu_custom_call.1} parent=0
    #allocation3 [shape = 'u8[4096]{0}', space=vmem, size = 0x1000, scoped, tag = 'input window, operand 0, single buffered']
    #allocation4 [shape = 's32[1]{0}', space=sflag, size = 0x4, scoped, tag = 'scoped memory for tpu_custom_call.1']
    #allocation5 [shape = 'u8[6144]{0}', space=vmem, size = 0x1800, scoped, tag = 'input window, operand 1, single buffered']
    #allocation6 [shape = 's32[1]{0}', space=sflag, size = 0x4, scoped, tag = 'scoped memory for tpu_custom_call.1']
    #allocation7 [shape = 'u8[16384]{0}', space=vmem, size = 0x4000, scoped, tag = 'input window, operand 3, single buffered']
    %14 = vsyncpa [#allocation4], 0
    %15 = vsyncpa [#allocation6], 0
    // Predicated region
    $region2: #{tpu_custom_call.1} parent=1 // pred_check
      _
    $region3: #{tpu_custom_call.1} parent=1 // pred_check_branch
      %17 = sbr.rel (0) target = $region5
    $region4: #{tpu_custom_call.1} parent=1 // pred_region
      %s19 = ssub.s32 128, 128
      %20 = vsyncadd [#allocation4], %s19
      %s22 = sshll.u32 [#allocation3], 4
      %s23 = int_to_ptr.vmem [resolvable:$true] %s22
      %25 = dma.hbm_to_vmem [thread:$0]  %s0, 128, %s23, [#allocation4]
    $region5: #{tpu_custom_call.1} parent=1 // pred_fallthru
      _
    // Predicated region
    $region6: #{tpu_custom_call.1} parent=1 // pred_check
      _
    $region7: #{tpu_custom_call.1} parent=1 // pred_check_branch
      %27 = sbr.rel (0) target = $region9
    $region8: #{tpu_custom_call.1} parent=1 // pred_region
      %s29 = ssub.s32 192, 192
      %30 = vsyncadd [#allocation6], %s29
      %s31 = sshll.u32 [#allocation5], 4
      %s32 = int_to_ptr.vmem [resolvable:$true] %s31
      %37 = dma.hbm_to_vmem [thread:$0]  %s1, 192, %s32, [#allocation6], 64, 64, 4
    $region9: #{tpu_custom_call.1} parent=1 // pred_fallthru
      _
    // Predicated region
    $region10: #{tpu_custom_call.1} parent=1 // pred_check
      _
    $region11: #{tpu_custom_call.1} parent=1 // pred_check_branch
      %39 = sbr.rel (0) target = $region13
    $region12: #{tpu_custom_call.1} parent=1 // pred_region
      _
    $region13: #{tpu_custom_call.1} parent=1 // pred_fallthru
      _
    // Predicated region
    $region14: #{tpu_custom_call.1} parent=1 // pred_check
      _
    $region15: #{tpu_custom_call.1} parent=1 // pred_check_branch
      %41 = sbr.rel (0) target = $region17
    $region16: #{tpu_custom_call.1} parent=1 // pred_region
      %s43 = ssub.s32 512, 512
      %44 = vsyncadd [#allocation6], %s43
      %s45 = sshll.u32 [#allocation7], 4
      %s46 = int_to_ptr.vmem [resolvable:$true] %s45
      %51 = dma.hbm_to_vmem [thread:$0]  %s3, 512, %s46, [#allocation6], 64, 64, 4
    $region17: #{tpu_custom_call.1} parent=1 // pred_fallthru
      _
    // Predicated region
    $region18: #{tpu_custom_call.1} parent=1 // pred_check
      _
    $region19: #{tpu_custom_call.1} parent=1 // pred_check_branch
      %53 = sbr.rel (0) target = $region21
    $region20: #{tpu_custom_call.1} parent=1 // pred_region
      _
    $region21: #{tpu_custom_call.1} parent=1 // pred_fallthru
      _
    // Predicated region
    $region22: #{tpu_custom_call.1} parent=1 // pred_check
      _
    $region23: #{tpu_custom_call.1} parent=1 // pred_check_branch
      %55 = sbr.rel (0) target = $region25
    $region24: #{tpu_custom_call.1} parent=1 // pred_region
      _
    $region25: #{tpu_custom_call.1} parent=1 // pred_fallthru
      _
    // Predicated region
    $region26: #{tpu_custom_call.1} parent=1 // pred_check
      _
    $region27: #{tpu_custom_call.1} parent=1 // pred_check_branch
      %57 = sbr.rel (0) target = $region29
    $region28: #{tpu_custom_call.1} parent=1 // pred_region
      _
    $region29: #{tpu_custom_call.1} parent=1 // pred_fallthru
      _
    // Predicated region
    $region30: #{tpu_custom_call.1} parent=1 // pred_check
      _
    $region31: #{tpu_custom_call.1} parent=1 // pred_check_branch
      %59 = sbr.rel (0) target = $region33
    $region32: #{tpu_custom_call.1} parent=1 // pred_region
      %60 = dma.done [#allocation4], 128
    $region33: #{tpu_custom_call.1} parent=1 // pred_fallthru
      _
    // Predicated region
    $region34: #{tpu_custom_call.1} parent=1 // pred_check
      _
    $region35: #{tpu_custom_call.1} parent=1 // pred_check_branch
      %62 = sbr.rel (0) target = $region37
    $region36: #{tpu_custom_call.1} parent=1 // pred_region
      %63 = dma.done [#allocation6], 192
    $region37: #{tpu_custom_call.1} parent=1 // pred_fallthru
      _
    // Predicated region
    $region38: #{tpu_custom_call.1} parent=1 // pred_check
      _
    $region39: #{tpu_custom_call.1} parent=1 // pred_check_branch
      %65 = sbr.rel (0) target = $region41
    $region40: #{tpu_custom_call.1} parent=1 // pred_region
      %66 = dma.done [#allocation6], 512
    $region41: #{tpu_custom_call.1} parent=1 // pred_fallthru
      _
    %v68 = vld [vmem:[#allocation3] sm:$0xff]
    %v69 = vpack.c.bf16 %v68, %v68
    %v70 = vld [vmem:[#allocation5] sm:$0xf]
    %v71 = vld [vmem:[#allocation5 + $0x4] sm:$0xf]
    %v72 = vld [vmem:[#allocation5 + $0x8] sm:$0x1]
    %v73 = vld [vmem:[%s2] sm:$0x1]
    %v75 = vlaneseq
    %v76 = vshrl.u32 %v75, 7
    %v77 = vsub.s32 0, %v76
    %v78 = vrot.slane %v73, %v77
    %v83 = vunpack.c.l.b16 %v70
    %v84 = vunpack.c.l.b16 %v71
    %v85 = vunpack.c.l.b16 %v72
    %v86 = vpack.c.b16 %v84, %v83
    %v87 = vpack.c.b16 %v85, %v85
    %vm89 = vcmask 138240
    %v91 = vsel %vm89, %v69, 0
    %vm93 = vcmask 1040384
    %v94 = vsel 0, 4294967295, 65535
    %v95 = vsel %vm93, %v94, 0
    %v97 = vand.u32 %v87, %v95
    %99 = vmatprep.subr.bf16.mxu0 0
    %100 = vmatpush1.bf16.msra.mxu0 %v86
    %101 = vmatprep.subr.bf16.mxu0 0
    %102 = vmatpush1.bf16.msra.mxu0 %v97
    %103 = vmatprep.subr.bf16.mxu0 0
    %104 = vmatpush1.bf16.msra.mxu0 0
    %105 = vmatprep.subr.bf16.mxu0 0
    %106 = vmatpush1.bf16.msra.mxu0 0
    %107 = vmatprep.subr.bf16.mxu0 0
    %108 = vmatpush1.bf16.msra.mxu0 0
    %109 = vmatprep.subr.bf16.mxu0 0
    %110 = vmatpush1.bf16.msra.mxu0 0
    %111 = vmatprep.subr.bf16.mxu0 0
    %112 = vmatpush1.bf16.msra.mxu0 0
    %113 = vmatprep.subr.bf16.mxu0 0
    %114 = vmatpush1.bf16.msra.mxu0 0
    %115 = vmatprep.subr.bf16.mxu0 0
    %116 = vmatpush1.bf16.msra.mxu0 0
    %117 = vmatprep.subr.bf16.mxu0 0
    %118 = vmatpush1.bf16.msra.mxu0 0
    %119 = vmatprep.subr.bf16.mxu0 0
    %120 = vmatpush1.bf16.msra.mxu0 0
    %121 = vmatprep.subr.bf16.mxu0 0
    %122 = vmatpush1.bf16.msra.mxu0 0
    %123 = vmatprep.subr.bf16.mxu0 0
    %124 = vmatpush1.bf16.msra.mxu0 0
    %125 = vmatprep.subr.bf16.mxu0 0
    %126 = vmatpush1.bf16.msra.mxu0 0
    %127 = vmatprep.subr.bf16.mxu0 0
    %128 = vmatpush1.bf16.msra.mxu0 0
    %129 = vmatprep.subr.bf16.mxu0 0
    %130 = vmatpush1.bf16.msra.mxu0 0
    %131 = vmatprep.mubr.bf16.mxu0 0
    %132 = vmatmul.mubr.bf16.gmra.mrb[0].mxu0 %v91
    %v133 = vpop.f32.mrb[0].mxu0
    %v134 = vadd.f32 %v78, %v133
    %v135 = vpop.f32.mrb[0].mxu0
    %v136 = vpop.f32.mrb[0].mxu0
    %v137 = vpop.f32.mrb[0].mxu0
    %138 = vdwg.mxu0
    %v139 = vmax.f32 %v134, 0.0
    %v140 = vpack.c.bf16 %v139, %v139
    %v141 = vld [vmem:[#allocation7] sm:$0xf]
    %v142 = vld [vmem:[#allocation7 + $0x4] sm:$0xf]
    %v143 = vld [vmem:[#allocation7 + $0x8] sm:$0xf]
    %v144 = vld [vmem:[#allocation7 + $0xc] sm:$0xf]
    %v145 = vld [vmem:[#allocation7 + $0x10] sm:$0xf]
    %v146 = vld [vmem:[#allocation7 + $0x14] sm:$0xf]
    %v147 = vld [vmem:[#allocation7 + $0x18] sm:$0xf]
    %v148 = vld [vmem:[#allocation7 + $0x1c] sm:$0xf]
    %v149 = vld [vmem:[%s4] sm:$0x1]
    %v151 = vlaneseq
    %v152 = vshrl.u32 %v151, 7
    %v153 = vsub.s32 0, %v152
    %v154 = vrot.slane %v149, %v153
    %v164 = vunpack.c.l.b16 %v141
    %v165 = vunpack.c.l.b16 %v142
    %v166 = vunpack.c.l.b16 %v143
    %v167 = vunpack.c.l.b16 %v144
    %v168 = vunpack.c.l.b16 %v145
    %v169 = vunpack.c.l.b16 %v146
    %v170 = vunpack.c.l.b16 %v147
    %v171 = vunpack.c.l.b16 %v148
    %v172 = vpack.c.b16 %v165, %v164
    %v173 = vpack.c.b16 %v167, %v166
    %v174 = vpack.c.b16 %v169, %v168
    %v175 = vpack.c.b16 %v171, %v170
    %vm180 = vcmask 523264
    %v182 = vsel %vm180, %v140, 0
    %184 = vmatprep.subr.bf16.mxu0 0
    %185 = vmatpush1.bf16.msra.mxu0 %v172
    %186 = vmatprep.subr.bf16.mxu0 0
    %187 = vmatpush1.bf16.msra.mxu0 %v173
    %188 = vmatprep.subr.bf16.mxu0 0
    %189 = vmatpush1.bf16.msra.mxu0 %v174
    %190 = vmatprep.subr.bf16.mxu0 0
    %191 = vmatpush1.bf16.msra.mxu0 %v175
    %192 = vmatprep.subr.bf16.mxu0 0
    %193 = vmatpush1.bf16.msra.mxu0 0
    %194 = vmatprep.subr.bf16.mxu0 0
    %195 = vmatpush1.bf16.msra.mxu0 0
    %196 = vmatprep.subr.bf16.mxu0 0
    %197 = vmatpush1.bf16.msra.mxu0 0
    %198 = vmatprep.subr.bf16.mxu0 0
    %199 = vmatpush1.bf16.msra.mxu0 0
    %200 = vmatprep.subr.bf16.mxu0 0
    %201 = vmatpush1.bf16.msra.mxu0 0
    %202 = vmatprep.subr.bf16.mxu0 0
    %203 = vmatpush1.bf16.msra.mxu0 0
    %204 = vmatprep.subr.bf16.mxu0 0
    %205 = vmatpush1.bf16.msra.mxu0 0
    %206 = vmatprep.subr.bf16.mxu0 0
    %207 = vmatpush1.bf16.msra.mxu0 0
    %208 = vmatprep.subr.bf16.mxu0 0
    %209 = vmatpush1.bf16.msra.mxu0 0
    %210 = vmatprep.subr.bf16.mxu0 0
    %211 = vmatpush1.bf16.msra.mxu0 0
    %212 = vmatprep.subr.bf16.mxu0 0
    %213 = vmatpush1.bf16.msra.mxu0 0
    %214 = vmatprep.subr.bf16.mxu0 0
    %215 = vmatpush1.bf16.msra.mxu0 0
    %216 = vmatprep.mubr.bf16.mxu0 0
    %217 = vmatmul.mubr.bf16.gmra.mrb[0].mxu0 %v182
    %v218 = vpop.f32.mrb[0].mxu0
    %v219 = vadd.f32 %v154, %v218
    %v220 = vpop.f32.mrb[0].mxu0
    %v221 = vpop.f32.mrb[0].mxu0
    %v222 = vpop.f32.mrb[0].mxu0
    %223 = vdwg.mxu0
    %v224 = vmax.f32 %v219, 0.0
    %v225 = vld [vmem:[%s5] sm:$0x1]
    %v227 = vlaneseq
    %v228 = vshrl.u32 %v227, 7
    %v229 = vsub.s32 0, %v228
    %v230 = vrot.slane %v225, %v229
    %v232 = vmul.f32 %v224, %v230
    %v233 = vsel %vm180, %v232, 0.0
    %234 = vadd.xlane.f32.xlu0 %v233
    %v235 = vpop.xlane.xlu0 %234
    %v236 = vld [vmem:[#allocation2] sm:$0x1]
    %v238 = vlaneseq
    %v239 = vshrl.u32 %v238, 7
    %v240 = vsub.s32 0, %v239
    %v241 = vrot.slane %v236, %v240
    %v243 = vadd.f32 %v235, %v241
    %vm244 = vcmask 7168
    %245 = vst.msk [vmem:[%s7] sm:$0xff] %vm244, %v243
    // Predicated region
    $region42: #{tpu_custom_call.1} parent=1 // pred_check
      _
    $region43: #{tpu_custom_call.1} parent=1 // pred_check_branch
      %247 = sbr.rel (0) target = $region45
    $region44: #{tpu_custom_call.1} parent=1 // pred_region
      _
    $region45: #{tpu_custom_call.1} parent=1 // pred_fallthru
      _
    // Predicated region
    $region46: #{tpu_custom_call.1} parent=1 // pred_check
      _
    $region47: #{tpu_custom_call.1} parent=1 // pred_check_branch
      %249 = sbr.rel (0) target = $region49
    $region48: #{tpu_custom_call.1} parent=1 // pred_region
      _
    $region49: #{tpu_custom_call.1} parent=1 // pred_fallthru
      _
    %250 = vsyncpa [#allocation4], 1
    %251 = vsyncpa [#allocation6], 1

</llo_original>
